<compile_context>
chip_gen: v6e
topology: v6e:2x2x1
jax: 0.10.0
libtpu: 0.0.40
codegen_flags: <defaults>
</compile_context>

<pallas_src>
import functools

import jax
import jax.numpy as jnp
from jax.experimental import pallas as pl
from jax.experimental.pallas import tpu as pltpu

_LANES = 128


def _identity_kernel(x_ref, o_ref):
    # Pure streaming copy of the current VMEM tile.
    o_ref[...] = x_ref[...]


def _sublane_multiple(dtype) -> int:
    """Minimum sublane multiple so packed dtypes fill the vreg."""
    itemsize = jnp.dtype(dtype).itemsize
    if itemsize >= 4:
        return 8
    if itemsize == 2:
        return 16
    return 32  # int8 / fp8


def _copy_2d(x2, *, target_block_bytes, vmem_limit_bytes):
    """Pallas streaming copy of a (rows, 128) lane-dense array."""
    rows, cols = x2.shape
    dtype = x2.dtype

    sub = _sublane_multiple(dtype)
    itemsize = jnp.dtype(dtype).itemsize
    bytes_per_row = cols * itemsize
    # Biggest row tile <= target_block_bytes, kept a sublane multiple.
    tm_max = max(sub, (target_block_bytes // bytes_per_row) // sub * sub)
    # Either a multiple of `sub`, or the full (unpadded) row extent; the last
    # grid block may be ragged -- Pallas masks the out-of-bounds stores.
    tm = min(tm_max, rows)
    grid_m = pl.cdiv(rows, tm)

    return pl.pallas_call(
        _identity_kernel,
        out_shape=jax.ShapeDtypeStruct((rows, cols), dtype),
        grid_spec=pltpu.PrefetchScalarGridSpec(
            num_scalar_prefetch=0,
            grid=(grid_m,),
            in_specs=[pl.BlockSpec((tm, cols), lambda i: (i, 0))],
            out_specs=pl.BlockSpec((tm, cols), lambda i: (i, 0)),
        ),
        compiler_params=pltpu.CompilerParams(
            dimension_semantics=("parallel",),
            vmem_limit_bytes=vmem_limit_bytes,
        ),
        # No input_output_aliases: the input here is a reshape of a
        # non-donated jit parameter, and a must-alias contract would force
        # XLA to insert a defensive full-tensor copy.
    )(x2)


@functools.partial(
    jax.jit, static_argnames=("target_block_bytes", "vmem_limit_bytes")
)
def identity_copy(x,
                  *,
                  target_block_bytes: int = 8 * 1024 * 1024,
                  vmem_limit_bytes: int = 48 * 1024 * 1024):
    """Materialized identity: returns a bit-exact copy of x via Pallas."""
    orig_shape = x.shape
    n = x.size
    if n == 0:
        return x  # nothing to copy

    cols = _LANES
    rows_bulk = n // cols
    tail_len = n - rows_bulk * cols

    if tail_len == 0:
        # Aligned fast path: no pad, no slice -- exactly read n + write n.
        x2 = x.reshape(rows_bulk, cols)
        out2 = _copy_2d(x2,
                        target_block_bytes=target_block_bytes,
                        vmem_limit_bytes=vmem_limit_bytes)
        return out2.reshape(orig_shape)

    if rows_bulk == 0:
        # Fewer than 128 elements: not worth a kernel launch; identity
        # semantics are preserved by returning the input directly.
        return x

    # Ragged path: stream the lane-aligned bulk through the kernel and carry
    # the small (<128-element) tail alongside -- no whole-array pad pass.
    flat = x.reshape(-1)
    bulk = flat[: rows_bulk * cols].reshape(rows_bulk, cols)
    tail = flat[rows_bulk * cols:]
    out_bulk = _copy_2d(bulk,
                        target_block_bytes=target_block_bytes,
                        vmem_limit_bytes=vmem_limit_bytes)
    return jnp.concatenate([out_bulk.reshape(-1), tail]).reshape(orig_shape)


def identity(x, *, materialize: bool = False):
    """dgl Identity.forward: return the input unchanged.

    By default this is a true no-op (zero HBM traffic), matching
    `nn.Identity`.  Pass materialize=True to force a physical copy through
    the Pallas streaming kernel.
    """
    if not materialize:
        return x
    return identity_copy(x)


if __name__ == "__main__":
    key = jax.random.PRNGKey(0)

    # Aligned shape consistent with a generic feature tensor.
    x = jax.random.normal(key, (2, 4, 16, 16), dtype=jnp.float32)

    # 1) Default path: true no-op, exactly like nn.Identity.
    y0 = identity(x)
    jax.block_until_ready(y0)
    assert y0.shape == x.shape and y0.dtype == x.dtype
    assert bool(jnp.array_equal(y0, x))

    # 2) Materialized path exercises the Pallas kernel (aligned, no pad/slice).
    y = identity(x, materialize=True)
    jax.block_until_ready(y)
    assert y.shape == x.shape and y.dtype == x.dtype
    assert bool(jnp.array_equal(y, x))

    # 3) Ragged / non-128-multiple case exercises the bulk + tail path.
    k2 = jax.random.PRNGKey(1)
    x2 = jax.random.normal(k2, (3, 7, 13), dtype=jnp.bfloat16)
    y2 = identity(x2, materialize=True)
    jax.block_until_ready(y2)
    assert y2.shape == x2.shape and y2.dtype == x2.dtype
    assert bool(jnp.array_equal(y2, x2))

    # 4) Tiny (<128 element) case: identity short-circuits.
    x3 = jax.random.normal(jax.random.PRNGKey(2), (5,), dtype=jnp.float32)
    y3 = identity(x3, materialize=True)
    jax.block_until_ready(y3)
    assert bool(jnp.array_equal(y3, x3))

    print("KERNEL_OK")
</pallas_src>

<mosaic_0001>
module attributes {stable_mosaic.version = 11 : i64} {
  func.func @_identity_kernel(%arg0: i32, %arg1: memref<16x128xf32, #tpu.memory_space<vmem>>, %arg2: memref<16x128xf32, #tpu.memory_space<vmem>>) attributes {dimension_semantics = [#tpu.dimension_semantics<parallel>], iteration_bounds = array<i64: 1>, scalar_prefetch = 0 : i64, scratch_operands = 0 : i64, tpu.core_type = #tpu.core_type<tc>, window_params = [{transform_indices = @transform_0, window_bounds = array<i64: 16, 128>}, {transform_indices = @transform_1, window_bounds = array<i64: 16, 128>}]} {
    %c0 = arith.constant 0 : index
    %c0_0 = arith.constant 0 : index
    %0 = vector.load %arg1[%c0, %c0_0] : memref<16x128xf32, #tpu.memory_space<vmem>>, vector<16x128xf32>
    %c0_1 = arith.constant 0 : index
    %c0_2 = arith.constant 0 : index
    %1 = vector.load %arg2[%c0_1, %c0_2] : memref<16x128xf32, #tpu.memory_space<vmem>>, vector<16x128xf32>
    tpu.vector_store %arg2[%c0_1, %c0_2], %0 {strides = array<i32>} : memref<16x128xf32, #tpu.memory_space<vmem>>, vector<16x128xf32>,
    return
  }
  func.func @transform_0(%arg0: i32) -> (i32, i32) {
    %c0_i32 = arith.constant 0 : i32
    %c0_i32_0 = arith.constant 0 : i32
    return %arg0, %c0_i32 : i32, i32
  }
  func.func @transform_1(%arg0: i32) -> (i32, i32) {
    %c0_i32 = arith.constant 0 : i32
    %c0_i32_0 = arith.constant 0 : i32
    return %arg0, %c0_i32 : i32, i32
  }
}

</mosaic_0001>

<llo_original>
// kernel: identity_copy.1
$region0: #{identity_copy.1}
  #allocation0 [shape = 'u32[]', space=smem, size = 0x4, offset = 0x4, fixed_abs, tag = 'smem constant byte address 0x4 - core index']
  #allocation1 [shape = 'u32[144,128]{1,0:T(1,128)}', space=vmem, size = 0x12000, scoped, tag = 'internal scratch']
  %s0 = inlined_call_operand.vmem [shape: f32[16,128], index: 0, kind: input, shape index: {}]
  %s1 = inlined_call_operand.vmem [shape: f32[16,128], index: 1, kind: output, shape index: {}]
  %s2 = sld [smem:[#allocation0]]
  $region14: #{identity_copy.1} parent=0
    _
  %s4 = ssub.s32 1, %s2
  %s5 = scalar_select 0, %s4, %s2
  // Predicated region
  $region2: #{identity_copy.1} parent=0 // pred_check
    _
  $region3: #{identity_copy.1} parent=0 // pred_check_branch
    %7 = sbr.rel (0) target = $region5
  $region4: #{identity_copy.1} parent=0 // pred_region
    _
  $region5: #{identity_copy.1} parent=0 // pred_fallthru
    _
  %v8 = vld [vmem:[%s0] sm:$0xff]
  %v9 = vld [vmem:[%s0 + $0x8] sm:$0xff]
  %10 = vst [vmem:[%s1] sm:$0xff] %v8
  %11 = vst [vmem:[%s1 + $0x8] sm:$0xff] %v9
  // Predicated region
  $region6: #{identity_copy.1} parent=0 // pred_check
    _
  $region7: #{identity_copy.1} parent=0 // pred_check_branch
    %13 = sbr.rel (0) target = $region9
  $region8: #{identity_copy.1} parent=0 // pred_region
    _
  $region9: #{identity_copy.1} parent=0 // pred_fallthru
    _
  // Predicated region
  $region10: #{identity_copy.1} parent=0 // pred_check
    _
  $region11: #{identity_copy.1} parent=0 // pred_check_branch
    %15 = sbr.rel (0) target = $region13
  $region12: #{identity_copy.1} parent=0 // pred_region
    _
  $region13: #{identity_copy.1} parent=0 // pred_fallthru
    _

</llo_original>
